<compile_context>
chip_gen: v6e
topology: v6e:2x2x1
jax: 0.10.0
libtpu: 0.0.40
codegen_flags: <defaults>
</compile_context>

<pallas_src>
import math

import jax
import jax.numpy as jnp
from jax.experimental import pallas as pl
from jax.experimental.pallas import tpu as pltpu


# --------------------------------- kernels ---------------------------------

def _noisy_train_kernel_acc(x_ref, wmu_ref, wns_ref, ein_ref, beff_ref, o_ref,
                            acc_ref):
    """Training path with reduction over k: acc += x@Wmu + (x*eps_in)@Wnoise."""
    k = pl.program_id(2)

    @pl.when(k == 0)
    def _():
        acc_ref[...] = jnp.zeros_like(acc_ref)

    x = x_ref[...]                                   # [tm, tk]
    xn = x * ein_ref[...]                            # [tm, tk] * [1, tk]  (VPU)
    acc_ref[...] += (
        jnp.dot(x, wmu_ref[...], preferred_element_type=jnp.float32)
        + jnp.dot(xn, wns_ref[...], preferred_element_type=jnp.float32))

    @pl.when(k == pl.num_programs(2) - 1)
    def _():
        o_ref[...] = (acc_ref[...] + beff_ref[...]).astype(o_ref.dtype)


def _noisy_train_kernel_1k(x_ref, wmu_ref, wns_ref, ein_ref, beff_ref, o_ref):
    """Training path, single K tile: no accumulator, no pl.when."""
    x = x_ref[...]
    xn = x * ein_ref[...]
    y = (jnp.dot(x, wmu_ref[...], preferred_element_type=jnp.float32)
         + jnp.dot(xn, wns_ref[...], preferred_element_type=jnp.float32)
         + beff_ref[...])
    o_ref[...] = y.astype(o_ref.dtype)


def _linear_kernel_acc(x_ref, w_ref, b_ref, o_ref, acc_ref):
    """Eval path with reduction over k: plain linear on W_mu / b_mu."""
    k = pl.program_id(2)

    @pl.when(k == 0)
    def _():
        acc_ref[...] = jnp.zeros_like(acc_ref)

    acc_ref[...] += jnp.dot(x_ref[...], w_ref[...],
                            preferred_element_type=jnp.float32)

    @pl.when(k == pl.num_programs(2) - 1)
    def _():
        o_ref[...] = (acc_ref[...] + b_ref[...]).astype(o_ref.dtype)


def _linear_kernel_1k(x_ref, w_ref, b_ref, o_ref):
    """Eval path, single K tile."""
    y = (jnp.dot(x_ref[...], w_ref[...], preferred_element_type=jnp.float32)
         + b_ref[...])
    o_ref[...] = y.astype(o_ref.dtype)


# --------------------------------- helpers ---------------------------------

def _round_up(v, m):
    return ((v + m - 1) // m) * m


def _pick_tile(dim, max_tile):
    """Multiple-of-128 tile <= max_tile minimizing the padded size of `dim`.

    Returns (tile, padded_dim).  Prefers larger tiles on ties (fewer grid
    steps); if the whole dim fits in one 128-aligned tile, uses exactly that.
    """
    aligned = _round_up(dim, 128)
    if aligned <= max_tile:
        return aligned, aligned
    best_t, best_p = None, None
    for t in range(max_tile, 0, -128):
        p = _round_up(dim, t)
        if best_p is None or p < best_p:
            best_t, best_p = t, p
    return best_t, best_p


def _pad2(a, rows, cols):
    pr, pc = rows - a.shape[0], cols - a.shape[1]
    if pr == 0 and pc == 0:
        return a
    return jnp.pad(a, ((0, pr), (0, pc)))


def _vmem_limit_bytes():
    # Generation-aware scoped-VMEM cap: v5e/v6e have 128 MiB physical VMEM per
    # TensorCore (raise limit well past the 16/32 MiB scoped defaults), v7x has
    # only 64 MiB physical -> stay comfortably below the ceiling.
    try:
        cap = pltpu.get_tpu_info().vmem_capacity_bytes
    except Exception:
        cap = 64 << 20
    return (64 << 20) if cap >= (100 << 20) else (30 << 20)


# ---------------------- parameter prep (out of hot path) --------------------

def prepare_noisy_linear(params):
    """Pad + pre-transpose parameters into the kernel layout.

    Call once after init / reset_noise / optimizer updates and reuse the result
    across forward calls -- this hoists the weight-sized jnp.pad / transpose /
    eps_out fold out of the per-call path (it would otherwise roughly double
    the HBM traffic of this mem-bound op).
    NOTE: re-run this whenever weight_*/bias_*/eps_* change, or stale copies
    will be used.
    """
    weight_mu = params["weight_mu"]
    weight_sigma = params["weight_sigma"]
    bias_mu = params["bias_mu"]
    bias_sigma = params["bias_sigma"]
    eps_in = params["eps_in"]
    eps_out = params["eps_out"]

    F_out, F_in = weight_mu.shape
    tn, N_p = _pick_tile(F_out, 512)
    tk, K_p = _pick_tile(F_in, 1024)

    # Canonical [K, N] layout so the kernel does x[m,k] @ W[k,n] directly.
    wmu_t = _pad2(weight_mu.T, K_p, N_p)
    # Fold eps_out into the sigma weight: the kernel never needs the broadcast
    # eps_out multiply in its inner loop and W_eps is never materialized.
    wns_t = _pad2((weight_sigma * eps_out[:, None]).T, K_p, N_p)
    ein = _pad2(eps_in.reshape(1, F_in), 1, K_p)
    beff = _pad2((bias_mu + bias_sigma * eps_out).reshape(1, F_out), 1, N_p)
    bmu = _pad2(bias_mu.reshape(1, F_out), 1, N_p)

    return dict(F_in=F_in, F_out=F_out, tn=tn, tk=tk, N_p=N_p, K_p=K_p,
                wmu_t=wmu_t, wns_t=wns_t, ein=ein, beff=beff, bmu=bmu)


# --------------------------------- forward ---------------------------------

def noisy_linear_forward(prepared, x, *, training=True):
    """NoisyLinear forward.

    training=True : F.linear(x, W_mu + W_sigma*outer(eps_out,eps_in),
                             b_mu + b_sigma*eps_out) in factorized form.
    training=False: F.linear(x, W_mu, b_mu).
    """
    B, F_in = x.shape
    assert F_in == prepared["F_in"], "input feature mismatch"
    F_out = prepared["F_out"]
    tn, tk = prepared["tn"], prepared["tk"]
    N_p, K_p = prepared["N_p"], prepared["K_p"]

    # Batch tile as large as practical: weights are re-streamed from HBM once
    # per batch tile, so a big tm minimizes the dominant HBM traffic.
    tm = min(512, _round_up(B, 8))
    B_p = _round_up(B, tm)

    # v7x megacore: guarantee >= 2 parallel (i, j) grid steps so both
    # TensorCores get work (harmless no-op for v5e/v6e single-TC chips).
    if (B_p // tm) * (N_p // tn) == 1:
        if tn % 256 == 0:
            tn //= 2
        elif tm % 16 == 0:
            tm //= 2

    grid_i, grid_j, grid_k = B_p // tm, N_p // tn, K_p // tk
    x_p = _pad2(x, B_p, K_p)

    vmem_limit = _vmem_limit_bytes()
    out_shape = jax.ShapeDtypeStruct((B_p, N_p), x.dtype)

    if training:
        wmu_t = prepared["wmu_t"]
        wns_t = prepared["wns_t"]
        ein = prepared["ein"]
        beff = prepared["beff"]
        if grid_k == 1:
            # Single-K-tile fast path: no accumulator, no reduction axis.
            out_p = pl.pallas_call(
                _noisy_train_kernel_1k,
                out_shape=out_shape,
                grid_spec=pltpu.PrefetchScalarGridSpec(
                    num_scalar_prefetch=0,
                    grid=(grid_i, grid_j),
                    in_specs=[
                        pl.BlockSpec((tm, K_p), lambda i, j: (i, 0)),   # x
                        pl.BlockSpec((K_p, tn), lambda i, j: (0, j)),   # W_mu^T
                        pl.BlockSpec((K_p, tn), lambda i, j: (0, j)),   # (W_sig*eps_out)^T
                        pl.BlockSpec((1, K_p), lambda i, j: (0, 0)),    # eps_in
                        pl.BlockSpec((1, tn), lambda i, j: (0, j)),     # b_eff
                    ],
                    out_specs=pl.BlockSpec((tm, tn), lambda i, j: (i, j))),
                compiler_params=pltpu.CompilerParams(
                    dimension_semantics=("parallel", "parallel"),
                    vmem_limit_bytes=vmem_limit),
            )(x_p, wmu_t, wns_t, ein, beff)
        else:
            out_p = pl.pallas_call(
                _noisy_train_kernel_acc,
                out_shape=out_shape,
                grid_spec=pltpu.PrefetchScalarGridSpec(
                    num_scalar_prefetch=0,
                    grid=(grid_i, grid_j, grid_k),
                    in_specs=[
                        pl.BlockSpec((tm, tk), lambda i, j, k: (i, k)),   # x
                        pl.BlockSpec((tk, tn), lambda i, j, k: (k, j)),   # W_mu^T
                        pl.BlockSpec((tk, tn), lambda i, j, k: (k, j)),   # (W_sig*eps_out)^T
                        pl.BlockSpec((1, tk), lambda i, j, k: (0, k)),    # eps_in
                        pl.BlockSpec((1, tn), lambda i, j, k: (0, j)),    # b_eff
                    ],
                    out_specs=pl.BlockSpec((tm, tn), lambda i, j, k: (i, j)),
                    scratch_shapes=[pltpu.VMEM((tm, tn), jnp.float32)]),
                compiler_params=pltpu.CompilerParams(
                    dimension_semantics=("parallel", "parallel", "arbitrary"),
                    vmem_limit_bytes=vmem_limit),
            )(x_p, wmu_t, wns_t, ein, beff)
    else:
        wmu_t = prepared["wmu_t"]
        bmu = prepared["bmu"]
        if grid_k == 1:
            out_p = pl.pallas_call(
                _linear_kernel_1k,
                out_shape=out_shape,
                grid_spec=pltpu.PrefetchScalarGridSpec(
                    num_scalar_prefetch=0,
                    grid=(grid_i, grid_j),
                    in_specs=[
                        pl.BlockSpec((tm, K_p), lambda i, j: (i, 0)),   # x
                        pl.BlockSpec((K_p, tn), lambda i, j: (0, j)),   # W_mu^T
                        pl.BlockSpec((1, tn), lambda i, j: (0, j)),     # b_mu
                    ],
                    out_specs=pl.BlockSpec((tm, tn), lambda i, j: (i, j))),
                compiler_params=pltpu.CompilerParams(
                    dimension_semantics=("parallel", "parallel"),
                    vmem_limit_bytes=vmem_limit),
            )(x_p, wmu_t, bmu)
        else:
            out_p = pl.pallas_call(
                _linear_kernel_acc,
                out_shape=out_shape,
                grid_spec=pltpu.PrefetchScalarGridSpec(
                    num_scalar_prefetch=0,
                    grid=(grid_i, grid_j, grid_k),
                    in_specs=[
                        pl.BlockSpec((tm, tk), lambda i, j, k: (i, k)),   # x
                        pl.BlockSpec((tk, tn), lambda i, j, k: (k, j)),   # W_mu^T
                        pl.BlockSpec((1, tn), lambda i, j, k: (0, j)),    # b_mu
                    ],
                    out_specs=pl.BlockSpec((tm, tn), lambda i, j, k: (i, j)),
                    scratch_shapes=[pltpu.VMEM((tm, tn), jnp.float32)]),
                compiler_params=pltpu.CompilerParams(
                    dimension_semantics=("parallel", "parallel", "arbitrary"),
                    vmem_limit_bytes=vmem_limit),
            )(x_p, wmu_t, bmu)

    return out_p[:B, :F_out]


# ----------------------- parameter / noise initialization -------------------
# (reset_parameters / reset_noise equivalents; plain JAX glue outside the
#  kernel -- stateful torch buffers have no in-kernel equivalent.)

def _scale_noise(key, size):
    x = jax.random.normal(key, (size,), dtype=jnp.float32)
    return jnp.sign(x) * jnp.sqrt(jnp.abs(x))


def init_noisy_linear(key, in_features, out_features, std_init=0.5):
    k_wmu, k_bmu, k_ein, k_eout = jax.random.split(key, 4)
    mu_range = 1.0 / math.sqrt(in_features)

    weight_mu = jax.random.uniform(
        k_wmu, (out_features, in_features), dtype=jnp.float32,
        minval=-mu_range, maxval=mu_range)
    weight_sigma = jnp.full((out_features, in_features),
                            std_init / math.sqrt(in_features), dtype=jnp.float32)
    bias_mu = jax.random.uniform(
        k_bmu, (out_features,), dtype=jnp.float32,
        minval=-mu_range, maxval=mu_range)
    bias_sigma = jnp.full((out_features,),
                          std_init / math.sqrt(out_features), dtype=jnp.float32)

    # Factorized Gaussian noise: keep only the factors.
    # weight_epsilon == outer(eps_out, eps_in), bias_epsilon == eps_out,
    # consumed in factorized form (W_eps never materialized).
    eps_in = _scale_noise(k_ein, in_features)
    eps_out = _scale_noise(k_eout, out_features)

    return dict(weight_mu=weight_mu, weight_sigma=weight_sigma,
                bias_mu=bias_mu, bias_sigma=bias_sigma,
                eps_in=eps_in, eps_out=eps_out)


def _reference(p, x, training):
    w_eps = jnp.outer(p["eps_out"], p["eps_in"])
    if training:
        w_eff = p["weight_mu"] + p["weight_sigma"] * w_eps
        b_eff = p["bias_mu"] + p["bias_sigma"] * p["eps_out"]
        return x @ w_eff.T + b_eff
    return x @ p["weight_mu"].T + p["bias_mu"]


# ------------------------------------ main ----------------------------------

if __name__ == "__main__":
    key = jax.random.PRNGKey(0)
    k_p1, k_x1, k_p2, k_x2 = jax.random.split(key, 4)

    # Case 1: small, unaligned shapes -> single-K-tile fast path.
    batch, in_features, out_features = 8, 32, 16
    p1 = init_noisy_linear(k_p1, in_features, out_features, std_init=0.5)
    prep1 = prepare_noisy_linear(p1)
    x1 = jax.random.normal(k_x1, (batch, in_features), dtype=jnp.float32)

    y1_train = jax.block_until_ready(noisy_linear_forward(prep1, x1, training=True))
    y1_eval = jax.block_until_ready(noisy_linear_forward(prep1, x1, training=False))

    assert y1_train.shape == (batch, out_features)
    assert y1_eval.shape == (batch, out_features)
    assert jnp.allclose(y1_train, _reference(p1, x1, True), atol=1e-4, rtol=1e-5), \
        float(jnp.max(jnp.abs(y1_train - _reference(p1, x1, True))))
    assert jnp.allclose(y1_eval, _reference(p1, x1, False), atol=1e-4, rtol=1e-5), \
        float(jnp.max(jnp.abs(y1_eval - _reference(p1, x1, False))))

    # Case 2: unaligned shapes that exercise the multi-K accumulator path.
    batch2, in2, out2 = 24, 1300, 300
    p2 = init_noisy_linear(k_p2, in2, out2, std_init=0.5)
    prep2 = prepare_noisy_linear(p2)
    x2 = jax.random.normal(k_x2, (batch2, in2), dtype=jnp.float32)

    y2_train = jax.block_until_ready(noisy_linear_forward(prep2, x2, training=True))
    y2_eval = jax.block_until_ready(noisy_linear_forward(prep2, x2, training=False))

    assert y2_train.shape == (batch2, out2)
    assert jnp.allclose(y2_train, _reference(p2, x2, True), atol=2e-3, rtol=1e-4), \
        float(jnp.max(jnp.abs(y2_train - _reference(p2, x2, True))))
    assert jnp.allclose(y2_eval, _reference(p2, x2, False), atol=2e-3, rtol=1e-4), \
        float(jnp.max(jnp.abs(y2_eval - _reference(p2, x2, False))))

    print("KERNEL_OK")
</pallas_src>

<mosaic_0001>
module attributes {stable_mosaic.version = 11 : i64} {
  func.func @_noisy_train_kernel_1k(%arg0: i32, %arg1: i32, %arg2: memref<8x128xf32, #tpu.memory_space<vmem>>, %arg3: memref<128x128xf32, #tpu.memory_space<vmem>>, %arg4: memref<128x128xf32, #tpu.memory_space<vmem>>, %arg5: memref<1x128xf32, #tpu.memory_space<vmem>>, %arg6: memref<1x128xf32, #tpu.memory_space<vmem>>, %arg7: memref<8x128xf32, #tpu.memory_space<vmem>>) attributes {dimension_semantics = [#tpu.dimension_semantics<parallel>, #tpu.dimension_semantics<parallel>], iteration_bounds = array<i64: 1, 1>, scalar_prefetch = 0 : i64, scratch_operands = 0 : i64, tpu.core_type = #tpu.core_type<tc>, window_params = [{transform_indices = @transform_0, window_bounds = array<i64: 8, 128>}, {transform_indices = @transform_1, window_bounds = array<i64: 128, 128>}, {transform_indices = @transform_2, window_bounds = array<i64: 128, 128>}, {pipeline_mode = #tpu.pipeline_mode<synchronous>, transform_indices = @transform_3, window_bounds = array<i64: 1, 128>}, {transform_indices = @transform_4, window_bounds = array<i64: 1, 128>}, {transform_indices = @transform_5, window_bounds = array<i64: 8, 128>}]} {
    %c0 = arith.constant 0 : index
    %c0_0 = arith.constant 0 : index
    %0 = vector.load %arg2[%c0, %c0_0] : memref<8x128xf32, #tpu.memory_space<vmem>>, vector<8x128xf32>
    %c0_1 = arith.constant 0 : index
    %c0_2 = arith.constant 0 : index
    %1 = vector.load %arg5[%c0_1, %c0_2] : memref<1x128xf32, #tpu.memory_space<vmem>>, vector<1x128xf32>
    %2 = vector.broadcast %1 : vector<1x128xf32> to vector<8x128xf32>
    %3 = arith.mulf %0, %2 : vector<8x128xf32>
    %c0_3 = arith.constant 0 : index
    %c0_4 = arith.constant 0 : index
    %4 = vector.load %arg3[%c0_3, %c0_4] : memref<128x128xf32, #tpu.memory_space<vmem>>, vector<128x128xf32>
    %cst = arith.constant dense<0.000000e+00> : vector<8x128xf32>
    %5 = tpu.matmul %0, %4, %cst {dimension_numbers = #tpu.dot_dimension_numbers<[1], [0], [0], [1], [0, 0, 1, 1], [], []>} : vector<8x128xf32>, vector<128x128xf32>, vector<8x128xf32> -> vector<8x128xf32>
    %c0_5 = arith.constant 0 : index
    %c0_6 = arith.constant 0 : index
    %6 = vector.load %arg4[%c0_5, %c0_6] : memref<128x128xf32, #tpu.memory_space<vmem>>, vector<128x128xf32>
    %cst_7 = arith.constant dense<0.000000e+00> : vector<8x128xf32>
    %7 = tpu.matmul %3, %6, %cst_7 {dimension_numbers = #tpu.dot_dimension_numbers<[1], [0], [0], [1], [0, 0, 1, 1], [], []>} : vector<8x128xf32>, vector<128x128xf32>, vector<8x128xf32> -> vector<8x128xf32>
    %8 = arith.addf %5, %7 : vector<8x128xf32>
    %c0_8 = arith.constant 0 : index
    %c0_9 = arith.constant 0 : index
    %9 = vector.load %arg6[%c0_8, %c0_9] : memref<1x128xf32, #tpu.memory_space<vmem>>, vector<1x128xf32>
    %10 = vector.broadcast %9 : vector<1x128xf32> to vector<8x128xf32>
    %11 = arith.addf %8, %10 : vector<8x128xf32>
    %c0_10 = arith.constant 0 : index
    %c0_11 = arith.constant 0 : index
    %12 = vector.load %arg7[%c0_10, %c0_11] : memref<8x128xf32, #tpu.memory_space<vmem>>, vector<8x128xf32>
    tpu.vector_store %arg7[%c0_10, %c0_11], %11 {strides = array<i32>} : memref<8x128xf32, #tpu.memory_space<vmem>>, vector<8x128xf32>,
    return
  }
  func.func @transform_0(%arg0: i32, %arg1: i32) -> (i32, i32) {
    %c0_i32 = arith.constant 0 : i32
    %c0_i32_0 = arith.constant 0 : i32
    return %arg0, %c0_i32 : i32, i32
  }
  func.func @transform_1(%arg0: i32, %arg1: i32) -> (i32, i32) {
    %c0_i32 = arith.constant 0 : i32
    %c0_i32_0 = arith.constant 0 : i32
    return %c0_i32, %arg1 : i32, i32
  }
  func.func @transform_2(%arg0: i32, %arg1: i32) -> (i32, i32) {
    %c0_i32 = arith.constant 0 : i32
    %c0_i32_0 = arith.constant 0 : i32
    return %c0_i32, %arg1 : i32, i32
  }
  func.func @transform_3(%arg0: i32, %arg1: i32) -> (i32, i32) {
    %c0_i32 = arith.constant 0 : i32
    %c0_i32_0 = arith.constant 0 : i32
    %c0_i32_1 = arith.constant 0 : i32
    return %c0_i32, %c0_i32_0 : i32, i32
  }
  func.func @transform_4(%arg0: i32, %arg1: i32) -> (i32, i32) {
    %c0_i32 = arith.constant 0 : i32
    %c0_i32_0 = arith.constant 0 : i32
    return %c0_i32, %arg1 : i32, i32
  }
  func.func @transform_5(%arg0: i32, %arg1: i32) -> (i32, i32) {
    %c0_i32 = arith.constant 0 : i32
    return %arg0, %arg1 : i32, i32
  }
}

</mosaic_0001>

<llo_original>
// kernel: tpu_custom_call.1
$region0: #{tpu_custom_call.1}
  #allocation0 [shape = 'u32[]', space=smem, size = 0x4, offset = 0x4, fixed_abs, tag = 'smem constant byte address 0x4 - core index']
  #allocation1 [shape = 'u32[144,128]{1,0:T(1,128)}', space=vmem, size = 0x12000, scoped, tag = 'internal scratch']
  %s0 = inlined_call_operand.hbm [shape: f32[8,128], index: 0, kind: input, shape index: {}]
  %s1 = inlined_call_operand.hbm [shape: f32[128,128], index: 1, kind: input, shape index: {}]
  %s2 = inlined_call_operand.hbm [shape: f32[128,128], index: 2, kind: input, shape index: {}]
  %s3 = inlined_call_operand.vmem [shape: f32[1,128], index: 3, kind: input, shape index: {}]
  %s4 = inlined_call_operand.vmem [shape: f32[1,128], index: 4, kind: input, shape index: {}]
  %s5 = inlined_call_operand.hbm [shape: f32[8,128], index: 5, kind: output, shape index: {}]
  %s6 = sld [smem:[#allocation0]]
  $region42: #{tpu_custom_call.1} parent=0
    _
  %s8 = ssub.s32 1, %s6
  %s9 = scalar_select 0, %s8, %s6
  $region1: #{tpu_custom_call.1} parent=0
    #allocation2 [shape = 'u8[4096]{0}', space=vmem, size = 0x1000, scoped, tag = 'input window, operand 0, single buffered']
    #allocation3 [shape = 's32[1]{0}', space=sflag, size = 0x4, scoped, tag = 'scoped memory for tpu_custom_call.1']
    #allocation4 [shape = 's32[1]{0}', space=sflag, size = 0x4, scoped, tag = 'scoped memory for tpu_custom_call.1']
    #allocation5 [shape = 'u8[65536]{0}', space=vmem, size = 0x10000, scoped, tag = 'input window, operand 1, single buffered']
    #allocation6 [shape = 's32[1]{0}', space=sflag, size = 0x4, scoped, tag = 'scoped memory for tpu_custom_call.1']
    #allocation7 [shape = 'u8[65536]{0}', space=vmem, size = 0x10000, scoped, tag = 'input window, operand 2, single buffered']
    #allocation8 [shape = 'u8[4096]{0}', space=vmem, size = 0x1000, scoped, tag = 'output window, operand 0, single buffered']
    %10 = vsyncpa [#allocation3], 0
    %11 = vsyncpa [#allocation6], 0
    %12 = vsyncpa [#allocation4], 0
    // Predicated region
    $region2: #{tpu_custom_call.1} parent=1 // pred_check
      _
    $region3: #{tpu_custom_call.1} parent=1 // pred_check_branch
      %14 = sbr.rel (0) target = $region5
    $region4: #{tpu_custom_call.1} parent=1 // pred_region
      %s16 = ssub.s32 128, 128
      %17 = vsyncadd [#allocation3], %s16
      %s19 = sshll.u32 [#allocation2], 4
      %s20 = int_to_ptr.vmem [resolvable:$true] %s19
      %22 = dma.hbm_to_vmem [thread:$0]  %s0, 128, %s20, [#allocation3]
    $region5: #{tpu_custom_call.1} parent=1 // pred_fallthru
      _
    // Predicated region
    $region6: #{tpu_custom_call.1} parent=1 // pred_check
      _
    $region7: #{tpu_custom_call.1} parent=1 // pred_check_branch
      %24 = sbr.rel (0) target = $region9
    $region8: #{tpu_custom_call.1} parent=1 // pred_region
      %s26 = ssub.s32 2048, 2048
      %27 = vsyncadd [#allocation6], %s26
      %s28 = sshll.u32 [#allocation5], 4
      %s29 = int_to_ptr.vmem [resolvable:$true] %s28
      %34 = dma.hbm_to_vmem [thread:$0]  %s1, 2048, %s29, [#allocation6], 128, 128, 8
    $region9: #{tpu_custom_call.1} parent=1 // pred_fallthru
      _
    // Predicated region
    $region10: #{tpu_custom_call.1} parent=1 // pred_check
      _
    $region11: #{tpu_custom_call.1} parent=1 // pred_check_branch
      %36 = sbr.rel (0) target = $region13
    $region12: #{tpu_custom_call.1} parent=1 // pred_region
      %s38 = ssub.s32 2048, 2048
      %39 = vsyncadd [#allocation6], %s38
      %s40 = sshll.u32 [#allocation7], 4
      %s41 = int_to_ptr.vmem [resolvable:$true] %s40
      %46 = dma.hbm_to_vmem [thread:$0]  %s2, 2048, %s41, [#allocation6], 128, 128, 8
    $region13: #{tpu_custom_call.1} parent=1 // pred_fallthru
      _
    // Predicated region
    $region14: #{tpu_custom_call.1} parent=1 // pred_check
      _
    $region15: #{tpu_custom_call.1} parent=1 // pred_check_branch
      %48 = sbr.rel (0) target = $region17
    $region16: #{tpu_custom_call.1} parent=1 // pred_region
      _
    $region17: #{tpu_custom_call.1} parent=1 // pred_fallthru
      _
    // Predicated region
    $region18: #{tpu_custom_call.1} parent=1 // pred_check
      _
    $region19: #{tpu_custom_call.1} parent=1 // pred_check_branch
      %50 = sbr.rel (0) target = $region21
    $region20: #{tpu_custom_call.1} parent=1 // pred_region
      _
    $region21: #{tpu_custom_call.1} parent=1 // pred_fallthru
      _
    // Predicated region
    $region22: #{tpu_custom_call.1} parent=1 // pred_check
      _
    $region23: #{tpu_custom_call.1} parent=1 // pred_check_branch
      %52 = sbr.rel (0) target = $region25
    $region24: #{tpu_custom_call.1} parent=1 // pred_region
      %53 = dma.done [#allocation3], 128
    $region25: #{tpu_custom_call.1} parent=1 // pred_fallthru
      _
    // Predicated region
    $region26: #{tpu_custom_call.1} parent=1 // pred_check
      _
    $region27: #{tpu_custom_call.1} parent=1 // pred_check_branch
      %55 = sbr.rel (0) target = $region29
    $region28: #{tpu_custom_call.1} parent=1 // pred_region
      %56 = dma.done [#allocation6], 2048
    $region29: #{tpu_custom_call.1} parent=1 // pred_fallthru
      _
    // Predicated region
    $region30: #{tpu_custom_call.1} parent=1 // pred_check
      _
    $region31: #{tpu_custom_call.1} parent=1 // pred_check_branch
      %58 = sbr.rel (0) target = $region33
    $region32: #{tpu_custom_call.1} parent=1 // pred_region
      %59 = dma.done [#allocation6], 2048
    $region33: #{tpu_custom_call.1} parent=1 // pred_fallthru
      _
    %v60 = vld [vmem:[#allocation2] sm:$0xff]
    %v61 = vld [vmem:[%s3] sm:$0x1]
    %v63 = vlaneseq
    %v64 = vshrl.u32 %v63, 7
    %v65 = vsub.s32 0, %v64
    %v66 = vrot.slane %v61, %v65
    %v68 = vmul.f32 %v60, %v66
    %v69 = vld [vmem:[#allocation5] sm:$0xff]
    %v70 = vld [vmem:[#allocation5 + $0x8] sm:$0xff]
    %v71 = vld [vmem:[#allocation5 + $0x10] sm:$0xff]
    %v72 = vld [vmem:[#allocation5 + $0x18] sm:$0xff]
    %v73 = vld [vmem:[#allocation5 + $0x20] sm:$0xff]
    %v74 = vld [vmem:[#allocation5 + $0x28] sm:$0xff]
    %v75 = vld [vmem:[#allocation5 + $0x30] sm:$0xff]
    %v76 = vld [vmem:[#allocation5 + $0x38] sm:$0xff]
    %v77 = vld [vmem:[#allocation5 + $0x40] sm:$0xff]
    %v78 = vld [vmem:[#allocation5 + $0x48] sm:$0xff]
    %v79 = vld [vmem:[#allocation5 + $0x50] sm:$0xff]
    %v80 = vld [vmem:[#allocation5 + $0x58] sm:$0xff]
    %v81 = vld [vmem:[#allocation5 + $0x60] sm:$0xff]
    %v82 = vld [vmem:[#allocation5 + $0x68] sm:$0xff]
    %v83 = vld [vmem:[#allocation5 + $0x70] sm:$0xff]
    %v84 = vld [vmem:[#allocation5 + $0x78] sm:$0xff]
    %v85 = vld [vmem:[#allocation7] sm:$0xff]
    %v86 = vld [vmem:[#allocation7 + $0x8] sm:$0xff]
    %v87 = vld [vmem:[#allocation7 + $0x10] sm:$0xff]
    %v88 = vld [vmem:[#allocation7 + $0x18] sm:$0xff]
    %v89 = vld [vmem:[#allocation7 + $0x20] sm:$0xff]
    %v90 = vld [vmem:[#allocation7 + $0x28] sm:$0xff]
    %v91 = vld [vmem:[#allocation7 + $0x30] sm:$0xff]
    %v92 = vld [vmem:[#allocation7 + $0x38] sm:$0xff]
    %v93 = vld [vmem:[#allocation7 + $0x40] sm:$0xff]
    %v94 = vld [vmem:[#allocation7 + $0x48] sm:$0xff]
    %v95 = vld [vmem:[#allocation7 + $0x50] sm:$0xff]
    %v96 = vld [vmem:[#allocation7 + $0x58] sm:$0xff]
    %v97 = vld [vmem:[#allocation7 + $0x60] sm:$0xff]
    %v98 = vld [vmem:[#allocation7 + $0x68] sm:$0xff]
    %v99 = vld [vmem:[#allocation7 + $0x70] sm:$0xff]
    %v100 = vld [vmem:[#allocation7 + $0x78] sm:$0xff]
    %101 = vmatprep.subr.mxu0 0.0
    %102 = vmatpush1.msra.mxu0 %v100
    %103 = vmatprep.subr.mxu0 0.0
    %104 = vmatpush1.msra.mxu0 %v99
    %105 = vmatprep.subr.mxu0 0.0
    %106 = vmatpush1.msra.mxu0 %v98
    %107 = vmatprep.subr.mxu0 0.0
    %108 = vmatpush1.msra.mxu0 %v97
    %109 = vmatprep.subr.mxu0 0.0
    %110 = vmatpush1.msra.mxu0 %v96
    %111 = vmatprep.subr.mxu0 0.0
    %112 = vmatpush1.msra.mxu0 %v95
    %113 = vmatprep.subr.mxu0 0.0
    %114 = vmatpush1.msra.mxu0 %v94
    %115 = vmatprep.subr.mxu0 0.0
    %116 = vmatpush1.msra.mxu0 %v93
    %117 = vmatprep.subr.mxu0 0.0
    %118 = vmatpush1.msra.mxu0 %v92
    %119 = vmatprep.subr.mxu0 0.0
    %120 = vmatpush1.msra.mxu0 %v91
    %121 = vmatprep.subr.mxu0 0.0
    %122 = vmatpush1.msra.mxu0 %v90
    %123 = vmatprep.subr.mxu0 0.0
    %124 = vmatpush1.msra.mxu0 %v89
    %125 = vmatprep.subr.mxu0 0.0
    %126 = vmatpush1.msra.mxu0 %v88
    %127 = vmatprep.subr.mxu0 0.0
    %128 = vmatpush1.msra.mxu0 %v87
    %129 = vmatprep.subr.mxu0 0.0
    %130 = vmatpush1.msra.mxu0 %v86
    %131 = vmatprep.subr.mxu0 0.0
    %132 = vmatpush1.msra.mxu0 %v85
    %133 = vmatprep.subr.mxu0 0.0
    %134 = vmatpush2.msra.mxu0 0.0
    %135 = vmatprep.subr.mxu0 0.0
    %136 = vmatpush2.msra.mxu0 0.0
    %137 = vmatprep.subr.mxu0 0.0
    %138 = vmatpush2.msra.mxu0 0.0
    %139 = vmatprep.subr.mxu0 0.0
    %140 = vmatpush2.msra.mxu0 0.0
    %141 = vmatprep.subr.mxu0 0.0
    %142 = vmatpush2.msra.mxu0 0.0
    %143 = vmatprep.subr.mxu0 0.0
    %144 = vmatpush2.msra.mxu0 0.0
    %145 = vmatprep.subr.mxu0 0.0
    %146 = vmatpush2.msra.mxu0 0.0
    %147 = vmatprep.subr.mxu0 0.0
    %148 = vmatpush2.msra.mxu0 0.0
    %149 = vmatprep.subr.mxu0 0.0
    %150 = vmatpush2.msra.mxu0 0.0
    %151 = vmatprep.subr.mxu0 0.0
    %152 = vmatpush2.msra.mxu0 0.0
    %153 = vmatprep.subr.mxu0 0.0
    %154 = vmatpush2.msra.mxu0 0.0
    %155 = vmatprep.subr.mxu0 0.0
    %156 = vmatpush2.msra.mxu0 0.0
    %157 = vmatprep.subr.mxu0 0.0
    %158 = vmatpush2.msra.mxu0 0.0
    %159 = vmatprep.subr.mxu0 0.0
    %160 = vmatpush2.msra.mxu0 0.0
    %161 = vmatprep.subr.mxu0 0.0
    %162 = vmatpush2.msra.mxu0 0.0
    %163 = vmatprep.subr.mxu0 0.0
    %164 = vmatpush2.msra.mxu0 0.0
    %165 = vmatprep.mubr.f32.mxu0 0.0
    %166 = vmatmul.mubr.f32.gmra.mxu0 %v68
    %v167 = vpop.f32.mrf.mxu0
    %v168 = vadd.f32 0.0, %v167
    %v169 = vpop.f32.mrf.mxu0
    %170 = vdwg.mxu0
    %171 = vmatprep.subr.mxu0 0.0
    %172 = vmatpush1.msra.mxu0 %v84
    %173 = vmatprep.subr.mxu0 0.0
    %174 = vmatpush1.msra.mxu0 %v83
    %175 = vmatprep.subr.mxu0 0.0
    %176 = vmatpush1.msra.mxu0 %v82
    %177 = vmatprep.subr.mxu0 0.0
    %178 = vmatpush1.msra.mxu0 %v81
    %179 = vmatprep.subr.mxu0 0.0
    %180 = vmatpush1.msra.mxu0 %v80
    %181 = vmatprep.subr.mxu0 0.0
    %182 = vmatpush1.msra.mxu0 %v79
    %183 = vmatprep.subr.mxu0 0.0
    %184 = vmatpush1.msra.mxu0 %v78
    %185 = vmatprep.subr.mxu0 0.0
    %186 = vmatpush1.msra.mxu0 %v77
    %187 = vmatprep.subr.mxu0 0.0
    %188 = vmatpush1.msra.mxu0 %v76
    %189 = vmatprep.subr.mxu0 0.0
    %190 = vmatpush1.msra.mxu0 %v75
    %191 = vmatprep.subr.mxu0 0.0
    %192 = vmatpush1.msra.mxu0 %v74
    %193 = vmatprep.subr.mxu0 0.0
    %194 = vmatpush1.msra.mxu0 %v73
    %195 = vmatprep.subr.mxu0 0.0
    %196 = vmatpush1.msra.mxu0 %v72
    %197 = vmatprep.subr.mxu0 0.0
    %198 = vmatpush1.msra.mxu0 %v71
    %199 = vmatprep.subr.mxu0 0.0
    %200 = vmatpush1.msra.mxu0 %v70
    %201 = vmatprep.subr.mxu0 0.0
    %202 = vmatpush1.msra.mxu0 %v69
    %203 = vmatprep.subr.mxu0 0.0
    %204 = vmatpush2.msra.mxu0 0.0
    %205 = vmatprep.subr.mxu0 0.0
    %206 = vmatpush2.msra.mxu0 0.0
    %207 = vmatprep.subr.mxu0 0.0
    %208 = vmatpush2.msra.mxu0 0.0
    %209 = vmatprep.subr.mxu0 0.0
    %210 = vmatpush2.msra.mxu0 0.0
    %211 = vmatprep.subr.mxu0 0.0
    %212 = vmatpush2.msra.mxu0 0.0
    %213 = vmatprep.subr.mxu0 0.0
    %214 = vmatpush2.msra.mxu0 0.0
    %215 = vmatprep.subr.mxu0 0.0
    %216 = vmatpush2.msra.mxu0 0.0
    %217 = vmatprep.subr.mxu0 0.0
    %218 = vmatpush2.msra.mxu0 0.0
    %219 = vmatprep.subr.mxu0 0.0
    %220 = vmatpush2.msra.mxu0 0.0
    %221 = vmatprep.subr.mxu0 0.0
    %222 = vmatpush2.msra.mxu0 0.0
    %223 = vmatprep.subr.mxu0 0.0
    %224 = vmatpush2.msra.mxu0 0.0
    %225 = vmatprep.subr.mxu0 0.0
    %226 = vmatpush2.msra.mxu0 0.0
    %227 = vmatprep.subr.mxu0 0.0
    %228 = vmatpush2.msra.mxu0 0.0
    %229 = vmatprep.subr.mxu0 0.0
    %230 = vmatpush2.msra.mxu0 0.0
    %231 = vmatprep.subr.mxu0 0.0
    %232 = vmatpush2.msra.mxu0 0.0
    %233 = vmatprep.subr.mxu0 0.0
    %234 = vmatpush2.msra.mxu0 0.0
    %235 = vmatprep.mubr.f32.mxu0 0.0
    %236 = vmatmul.mubr.f32.gmra.mxu0 %v60
    %v237 = vpop.f32.mrf.mxu0
    %v238 = vadd.f32 %v168, %v237
    %v239 = vpop.f32.mrf.mxu0
    %240 = vdwg.mxu0
    %v241 = vld [vmem:[%s4] sm:$0x1]
    %v243 = vlaneseq
    %v244 = vshrl.u32 %v243, 7
    %v245 = vsub.s32 0, %v244
    %v246 = vrot.slane %v241, %v245
    %v248 = vadd.f32 %v238, %v246
    %249 = vst [vmem:[#allocation8] sm:$0xff] %v248
    // Predicated region
    $region34: #{tpu_custom_call.1} parent=1 // pred_check
      _
    $region35: #{tpu_custom_call.1} parent=1 // pred_check_branch
      %251 = sbr.rel (0) target = $region37
    $region36: #{tpu_custom_call.1} parent=1 // pred_region
      %s253 = ssub.s32 128, 128
      %254 = vsyncadd [#allocation4], %s253
      %s256 = sshll.u32 [#allocation8], 4
      %s257 = int_to_ptr.vmem [resolvable:$true] %s256
      %259 = dma.vmem_to_hbm [thread:$0]  %s257, 128, %s5, [#allocation4]
    $region37: #{tpu_custom_call.1} parent=1 // pred_fallthru
      _
    // Predicated region
    $region38: #{tpu_custom_call.1} parent=1 // pred_check
      _
    $region39: #{tpu_custom_call.1} parent=1 // pred_check_branch
      %261 = sbr.rel (0) target = $region41
    $region40: #{tpu_custom_call.1} parent=1 // pred_region
      %262 = dma.done [#allocation4], 128
    $region41: #{tpu_custom_call.1} parent=1 // pred_fallthru
      _
    %263 = vsyncpa [#allocation3], 1
    %264 = vsyncpa [#allocation6], 1
    %265 = vsyncpa [#allocation4], 1

</llo_original>
